<compile_context>
chip_gen: v6e
topology: v6e:2x2x1
jax: 0.10.0
libtpu: 0.0.40
codegen_flags: <defaults>
</compile_context>

<pallas_src>
import jax
import jax.numpy as jnp
from jax import lax
from jax.experimental import pallas as pl
from jax.experimental.pallas import tpu as pltpu


_VMEM_LIMIT_BYTES = 32 * 1024 * 1024   # explicit scoped-VMEM request (safe on v5e/v6e/v7x)
_VMEM_BUDGET = 8 * 1024 * 1024         # per-kernel working-set target (double-buffer headroom)


def _cparams(semantics):
    return pltpu.CompilerParams(dimension_semantics=semantics,
                                vmem_limit_bytes=_VMEM_LIMIT_BYTES)


def _largest_divisor_leq(n, cap):
    cap = max(1, min(n, cap))
    for d in range(cap, 0, -1):
        if n % d == 0:
            return d
    return 1


# ----------------------------- Pallas kernels -----------------------------

def _conv1x1_kernel(x_ref, w_ref, b_ref, o_ref):
    # x: (tile_M, Cin) f32, w: (Cin, Cout) bf16 (resident), b: (1, Cout) f32 (resident)
    x = x_ref[...].astype(jnp.bfloat16)
    acc = jnp.dot(x, w_ref[...], preferred_element_type=jnp.float32) + b_ref[...]
    o_ref[...] = acc.astype(o_ref.dtype)


def _lateral_fused_kernel(x_ref, prev_ref, w_ref, b_ref, o_ref):
    # fused = conv1x1(x) + nearest_upsample_2x(prev), one kernel, one HBM pass.
    # x_ref:    (1, 2*th2, W, Cin)   backbone feature rows (full-res level)
    # prev_ref: (1, th2,   W/2, C)   previous half-res top-down feature
    # o_ref:    (1, 2*th2, W, C)
    _, rows, W, _ = x_ref.shape
    W2 = prev_ref.shape[2]
    w = w_ref[...]
    b = b_ref[...]
    # 0/1 duplication matrix: (dup @ prev_row)[w] == prev_row[w // 2]  (exact)
    dup = (lax.broadcasted_iota(jnp.int32, (W, W2), 0) // 2
           == lax.broadcasted_iota(jnp.int32, (W, W2), 1)).astype(jnp.float32)

    def body(r, carry):
        x_row = x_ref[0, r].astype(jnp.bfloat16)                         # (W, Cin)
        lat = jnp.dot(x_row, w, preferred_element_type=jnp.float32) + b  # (W, C) f32
        p_row = prev_ref[0, r // 2]                                      # (W2, C) f32
        up = jnp.dot(dup, p_row, preferred_element_type=jnp.float32)     # (W, C) nearest x2
        o_ref[0, r] = (lat + up).astype(o_ref.dtype)
        return carry

    lax.fori_loop(0, rows, body, 0)


def _conv3x3_kernel(xp_ref, w_ref, b_ref, o_ref, halo_ref, sem_ref):
    # xp_ref:   HBM ref (N, H+2, W+2, Cin) zero-padded input (memory_space=pl.ANY)
    # w_ref:    (9*Cin, Cout) bf16, resident   b_ref: (1, Cout) f32, resident
    # o_ref:    (1, tile_H, W, Cout) output block
    # halo_ref: VMEM scratch (tile_H+2, W+2, Cin)
    n = pl.program_id(0)
    h = pl.program_id(1)
    _, tH, W, _ = o_ref.shape
    h0 = h * tH
    # single DMA of the halo tile -> ~1x HBM read of the feature map (was 9x before).
    # TODO(synk): the halo DMA is synchronous (not double-buffered across grid steps);
    # output/weight streams are still auto-pipelined by BlockSpec.
    cp = pltpu.make_async_copy(xp_ref.at[n, pl.ds(h0, tH + 2)], halo_ref, sem_ref)
    cp.start()
    cp.wait()

    w = w_ref[...]
    b = b_ref[...]

    def body(r, carry):
        # im2col for one output row: 9 taps concatenated along channels -> one fat matmul
        taps = [halo_ref[r + dy, pl.ds(dx, W), :].astype(jnp.bfloat16)
                for dy in range(3) for dx in range(3)]                   # 9 x (W, Cin)
        xcol = jnp.concatenate(taps, axis=-1)                            # (W, 9*Cin)
        acc = jnp.dot(xcol, w, preferred_element_type=jnp.float32) + b   # (W, Cout)
        o_ref[0, r] = acc.astype(o_ref.dtype)
        return carry

    lax.fori_loop(0, tH, body, 0)


def _maxpool2x2_kernel(x_ref, o_ref):
    # x_ref: (tb, 2, W2, 2, C) phase-separated view; o_ref: (tb, W2, C)
    v = x_ref[...]
    v = jnp.max(v, axis=3)        # over the W phase (sublane pairs)
    v = jnp.max(v, axis=1)        # over the H phase
    o_ref[...] = v


# ----------------------------- thin JAX wrappers -----------------------------

def conv1x1(x, w_bf16, b):
    # x: (N,H,W,Cin) f32, w_bf16: (Cin,Cout) bf16, b: (Cout,) f32
    N, H, W, Cin = x.shape
    Cout = w_bf16.shape[1]
    M = N * H * W
    x2 = x.reshape(M, Cin)                               # free (contiguous) reshape
    cap = max(8, _VMEM_BUDGET // (8 * (Cin + Cout)))     # f32 in+out, double-buffered
    tm = M if M <= cap else (cap // 8) * 8               # multiple of 8 or full dim
    grid = (pl.cdiv(M, tm),)
    out = pl.pallas_call(
        _conv1x1_kernel,
        out_shape=jax.ShapeDtypeStruct((M, Cout), x.dtype),
        grid_spec=pltpu.PrefetchScalarGridSpec(
            num_scalar_prefetch=0, grid=grid,
            in_specs=[pl.BlockSpec((tm, Cin), lambda i: (i, 0)),
                      pl.BlockSpec((Cin, Cout), lambda i: (0, 0)),
                      pl.BlockSpec((1, Cout), lambda i: (0, 0))],
            out_specs=pl.BlockSpec((tm, Cout), lambda i: (i, 0))),
        compiler_params=_cparams(("parallel",)),
    )(x2, w_bf16, b.reshape(1, Cout))
    return out.reshape(N, H, W, Cout)


def lateral_fused(x, prev, w_bf16, b):
    # fused = conv1x1(x) + nearest-2x-upsample(prev); x: (N,H,W,Cin), prev: (N,H/2,W/2,C)
    N, H, W, Cin = x.shape
    C = w_bf16.shape[1]
    H2, W2 = H // 2, W // 2
    per_row = 4 * W * (2 * Cin + 3 * C) + 1              # rough bytes per full-res row
    cap = max(2, _VMEM_BUDGET // per_row)
    th = min(H, cap - (cap % 2))                         # even number of full-res rows
    th = max(th, 2)
    th2 = th // 2
    grid = (N, pl.cdiv(H2, th2))
    return pl.pallas_call(
        _lateral_fused_kernel,
        out_shape=jax.ShapeDtypeStruct((N, H, W, C), x.dtype),
        grid_spec=pltpu.PrefetchScalarGridSpec(
            num_scalar_prefetch=0, grid=grid,
            in_specs=[pl.BlockSpec((1, th, W, Cin), lambda n, h: (n, h, 0, 0)),
                      pl.BlockSpec((1, th2, W2, C), lambda n, h: (n, h, 0, 0)),
                      pl.BlockSpec((Cin, C), lambda n, h: (0, 0)),
                      pl.BlockSpec((1, C), lambda n, h: (0, 0))],
            out_specs=pl.BlockSpec((1, th, W, C), lambda n, h: (n, h, 0, 0))),
        compiler_params=_cparams(("parallel", "parallel")),
    )(x, prev, w_bf16, b.reshape(1, C))


def conv3x3_same(x, w_col_bf16, b):
    # x: (N,H,W,Cin), w_col_bf16: (9*Cin, Cout), b: (Cout,); stride 1, padding 1.
    N, H, W, Cin = x.shape
    Cout = w_col_bf16.shape[1]
    xp = jnp.pad(x, ((0, 0), (1, 1), (1, 1), (0, 0)))    # single padded copy in HBM
    per_row = 4 * Cin * (W + 2) + 8 * Cout * W           # halo + double-buffered output
    cap = max(1, _VMEM_BUDGET // per_row)
    tH = _largest_divisor_leq(H, cap)                    # halo DMA needs exact H tiling
    grid = (N, H // tH)
    return pl.pallas_call(
        _conv3x3_kernel,
        out_shape=jax.ShapeDtypeStruct((N, H, W, Cout), x.dtype),
        grid_spec=pltpu.PrefetchScalarGridSpec(
            num_scalar_prefetch=0, grid=grid,
            in_specs=[pl.BlockSpec(memory_space=pl.ANY),            # padded map stays in HBM
                      pl.BlockSpec((9 * Cin, Cout), lambda n, h: (0, 0)),
                      pl.BlockSpec((1, Cout), lambda n, h: (0, 0))],
            out_specs=pl.BlockSpec((1, tH, W, Cout), lambda n, h: (n, h, 0, 0)),
            scratch_shapes=[pltpu.VMEM((tH + 2, W + 2, Cin), x.dtype),
                            pltpu.SemaphoreType.DMA]),
        compiler_params=_cparams(("parallel", "parallel")),
    )(xp, w_col_bf16, b.reshape(1, Cout))


def maxpool_2x2(x):
    # F.max_pool2d(kernel_size=2): stride 2, no padding, floors odd dims.
    N, H, W, C = x.shape
    H2, W2 = H // 2, W // 2
    x = x[:, :2 * H2, :2 * W2, :]
    x5 = x.reshape(N * H2, 2, W2, 2, C)                  # free (contiguous) reshape
    rows = N * H2
    per_row = 48 * W2 * C + 1
    tb = max(1, min(rows, _VMEM_BUDGET // per_row))
    grid = (pl.cdiv(rows, tb),)
    out = pl.pallas_call(
        _maxpool2x2_kernel,
        out_shape=jax.ShapeDtypeStruct((rows, W2, C), x.dtype),
        grid_spec=pltpu.PrefetchScalarGridSpec(
            num_scalar_prefetch=0, grid=grid,
            in_specs=[pl.BlockSpec((tb, 2, W2, 2, C), lambda i: (i, 0, 0, 0, 0))],
            out_specs=pl.BlockSpec((tb, W2, C), lambda i: (i, 0, 0))),
        compiler_params=_cparams(("parallel",)),
    )(x5)
    return out.reshape(N, H2, W2, C)


# ----------------------------- FPN module -----------------------------

class FPNPallas:
    def __init__(self, conf_backbone, key):
        self.backbone = conf_backbone['backbone_type']
        assert self.backbone in ['R50', 'R101']
        self.ch = conf_backbone['feature_channel_number']
        self.features_name = ['p2', 'p3', 'p4', 'p5', 'p6']

        in_channel = [2048, 1024, 512, 256]               # lateral inputs for [c5, c4, c3, c2]
        keys = iter(jax.random.split(key, 32))

        # TODO(synk): PyTorch Conv2d kaiming-uniform init + pretrained ResNet weights are
        # not reproducible here; shapes/structure match, values are random stand-ins.
        self.lateral_w = [jax.random.normal(next(keys), (c, self.ch), jnp.float32)
                          / jnp.sqrt(jnp.float32(c)) for c in in_channel]
        self.lateral_b = [0.01 * jax.random.normal(next(keys), (self.ch,), jnp.float32)
                          for _ in in_channel]
        self.output_w = [jax.random.normal(next(keys), (3, 3, self.ch, self.ch), jnp.float32)
                         / jnp.sqrt(jnp.float32(9 * self.ch)) for _ in range(4)]
        self.output_b = [0.01 * jax.random.normal(next(keys), (self.ch,), jnp.float32)
                         for _ in range(4)]

        # bf16 copies for the MXU (accumulation stays f32 in-kernel)
        self.lateral_w_bf16 = [w.astype(jnp.bfloat16) for w in self.lateral_w]
        self.output_w_col_bf16 = [w.reshape(9 * self.ch, self.ch).astype(jnp.bfloat16)
                                  for w in self.output_w]

        # TODO(synk): the pretrained torchvision ResNet-50/101 trunk is replaced by a
        # deterministic stand-in (strided mean pool + Pallas 1x1 projection) with the
        # exact strides (4/8/16/32) and channels (256/512/1024/2048) the FPN head needs.
        self.bb_strides = [4, 8, 16, 32]
        self.bb_channels = [256, 512, 1024, 2048]
        self.bb_w = [0.5 * jax.random.normal(next(keys), (3, c), jnp.float32)
                     for c in self.bb_channels]
        self.bb_w_bf16 = [w.astype(jnp.bfloat16) for w in self.bb_w]
        self.bb_b = [jnp.zeros((c,), jnp.float32) for c in self.bb_channels]

    def _backbone(self, x_nhwc):
        N, H, W, C = x_nhwc.shape
        feats = []
        for stride, w, b in zip(self.bb_strides, self.bb_w_bf16, self.bb_b):
            ds = x_nhwc.reshape(N, H // stride, stride, W // stride, stride, C).mean(axis=(2, 4))
            feats.append(conv1x1(ds, w, b))
        return feats  # [c2, c3, c4, c5]

    def __call__(self, x_nchw):
        x = jnp.transpose(x_nchw, (0, 2, 3, 1))           # NCHW -> NHWC
        c2, c3, c4, c5 = self._backbone(x)

        features = [c5, c4, c3, c2]
        lateral_ws = self.lateral_w_bf16
        output_features = []
        prev_feature = None
        for idx, feature in enumerate(features):
            if prev_feature is None:
                prev_feature = conv1x1(feature, lateral_ws[idx], self.lateral_b[idx])
            else:
                # fused: 1x1 lateral conv + nearest 2x upsample of prev + add, one kernel
                prev_feature = lateral_fused(feature, prev_feature,
                                             lateral_ws[idx], self.lateral_b[idx])
            output_features.append(conv3x3_same(prev_feature,
                                                self.output_w_col_bf16[idx],
                                                self.output_b[idx]))
        p6 = maxpool_2x2(output_features[0])
        output_features.insert(0, p6)
        return output_features                            # [p6, p5, p4, p3, p2], NHWC

    def get_feature_channel(self):
        return self.ch

    def get_feature_size(self, input_size):
        return [(int(input_size[0] / 2 ** i), int(input_size[1] / 2 ** i))
                for i in range(len(self.features_name) + 1, 1, -1)]


# ----------------------------- demo -----------------------------

if __name__ == "__main__":
    key = jax.random.PRNGKey(0)
    kp, kx = jax.random.split(key)

    conf = {'backbone_type': 'R50', 'feature_channel_number': 128}
    model = FPNPallas(conf, kp)

    # small NCHW input, like the PyTorch module expects (spatial divisible by 32)
    x = jax.random.normal(kx, (2, 3, 64, 64), jnp.float32)

    outs = model(x)
    outs = jax.block_until_ready(outs)

    # p6 1x1, p5 2x2, p4 4x4, p3 8x8, p2 16x16 -- all 128-channel, NHWC
    expected = [(2, 1, 1, 128), (2, 2, 2, 128), (2, 4, 4, 128),
                (2, 8, 8, 128), (2, 16, 16, 128)]
    assert [o.shape for o in outs] == expected, [o.shape for o in outs]
    assert all(bool(jnp.all(jnp.isfinite(o))) for o in outs)

    print("KERNEL_OK")
</pallas_src>

<mosaic_0001>
module attributes {stable_mosaic.version = 11 : i64} {
  func.func @_conv1x1_kernel(%arg0: i32, %arg1: memref<512x3xf32, #tpu.memory_space<vmem>>, %arg2: memref<3x256xbf16, #tpu.memory_space<vmem>>, %arg3: memref<1x256xf32, #tpu.memory_space<vmem>>, %arg4: memref<512x256xf32, #tpu.memory_space<vmem>>) attributes {dimension_semantics = [#tpu.dimension_semantics<parallel>], iteration_bounds = array<i64: 1>, scalar_prefetch = 0 : i64, scratch_operands = 0 : i64, tpu.core_type = #tpu.core_type<tc>, window_params = [{transform_indices = @transform_0, window_bounds = array<i64: 512, 3>}, {pipeline_mode = #tpu.pipeline_mode<synchronous>, transform_indices = @transform_1, window_bounds = array<i64: 3, 256>}, {pipeline_mode = #tpu.pipeline_mode<synchronous>, transform_indices = @transform_2, window_bounds = array<i64: 1, 256>}, {transform_indices = @transform_3, window_bounds = array<i64: 512, 256>}]} {
    %c0 = arith.constant 0 : index
    %c0_0 = arith.constant 0 : index
    %0 = vector.load %arg1[%c0, %c0_0] : memref<512x3xf32, #tpu.memory_space<vmem>>, vector<512x3xf32>
    %1 = arith.truncf %0 : vector<512x3xf32> to vector<512x3xbf16>
    %c0_1 = arith.constant 0 : index
    %c0_2 = arith.constant 0 : index
    %2 = vector.load %arg2[%c0_1, %c0_2] : memref<3x256xbf16, #tpu.memory_space<vmem>>, vector<3x256xbf16>
    %cst = arith.constant dense<0.000000e+00> : vector<512x256xf32>
    %3 = tpu.matmul %1, %2, %cst {dimension_numbers = #tpu.dot_dimension_numbers<[1], [0], [0], [1], [0, 0, 1, 1], [], []>} : vector<512x3xbf16>, vector<3x256xbf16>, vector<512x256xf32> -> vector<512x256xf32>
    %c0_3 = arith.constant 0 : index
    %c0_4 = arith.constant 0 : index
    %4 = vector.load %arg3[%c0_3, %c0_4] : memref<1x256xf32, #tpu.memory_space<vmem>>, vector<1x256xf32>
    %5 = vector.broadcast %4 : vector<1x256xf32> to vector<512x256xf32>
    %6 = arith.addf %3, %5 : vector<512x256xf32>
    %c0_5 = arith.constant 0 : index
    %c0_6 = arith.constant 0 : index
    %7 = vector.load %arg4[%c0_5, %c0_6] : memref<512x256xf32, #tpu.memory_space<vmem>>, vector<512x256xf32>
    tpu.vector_store %arg4[%c0_5, %c0_6], %6 {strides = array<i32>} : memref<512x256xf32, #tpu.memory_space<vmem>>, vector<512x256xf32>,
    return
  }
  func.func @transform_0(%arg0: i32) -> (i32, i32) {
    %c0_i32 = arith.constant 0 : i32
    %c0_i32_0 = arith.constant 0 : i32
    return %arg0, %c0_i32 : i32, i32
  }
  func.func @transform_1(%arg0: i32) -> (i32, i32) {
    %c0_i32 = arith.constant 0 : i32
    %c0_i32_0 = arith.constant 0 : i32
    %c0_i32_1 = arith.constant 0 : i32
    return %c0_i32, %c0_i32_0 : i32, i32
  }
  func.func @transform_2(%arg0: i32) -> (i32, i32) {
    %c0_i32 = arith.constant 0 : i32
    %c0_i32_0 = arith.constant 0 : i32
    %c0_i32_1 = arith.constant 0 : i32
    return %c0_i32, %c0_i32_0 : i32, i32
  }
  func.func @transform_3(%arg0: i32) -> (i32, i32) {
    %c0_i32 = arith.constant 0 : i32
    %c0_i32_0 = arith.constant 0 : i32
    return %arg0, %c0_i32 : i32, i32
  }
}

</mosaic_0001>

<llo_original>
// kernel: tpu_custom_call.1
$region0: #{tpu_custom_call.1}
  #allocation0 [shape = 'u32[]', space=smem, size = 0x4, offset = 0x4, fixed_abs, tag = 'smem constant byte address 0x4 - core index']
  #allocation1 [shape = 'u32[144,128]{1,0:T(1,128)}', space=vmem, size = 0x12000, scoped, tag = 'internal scratch']
  %s0 = inlined_call_operand.vmem [shape: f32[512,3], index: 0, kind: input, shape index: {}]
  %s1 = inlined_call_operand.vmem [shape: bf16[3,256], index: 1, kind: input, shape index: {}]
  %s2 = inlined_call_operand.vmem [shape: f32[1,256], index: 2, kind: input, shape index: {}]
  %s3 = inlined_call_operand.hbm [shape: f32[512,256], index: 3, kind: output, shape index: {}]
  %s4 = sld [smem:[#allocation0]]
  $region22: #{tpu_custom_call.1} parent=0
    _
  %s6 = ssub.s32 1, %s4
  %s7 = scalar_select 0, %s6, %s4
  $region1: #{tpu_custom_call.1} parent=0
    #allocation2 [shape = 'u8[524288]{0}', space=vmem, size = 0x80000, scoped, tag = 'output window, operand 0, single buffered']
    #allocation3 [shape = 's32[1]{0}', space=sflag, size = 0x4, scoped, tag = 'scoped memory for tpu_custom_call.1']
    %8 = vsyncpa [#allocation3], 0
    // Predicated region
    $region2: #{tpu_custom_call.1} parent=1 // pred_check
      _
    $region3: #{tpu_custom_call.1} parent=1 // pred_check_branch
      %10 = sbr.rel (0) target = $region5
    $region4: #{tpu_custom_call.1} parent=1 // pred_region
      _
    $region5: #{tpu_custom_call.1} parent=1 // pred_fallthru
      _
    // Predicated region
    $region6: #{tpu_custom_call.1} parent=1 // pred_check
      _
    $region7: #{tpu_custom_call.1} parent=1 // pred_check_branch
      %12 = sbr.rel (0) target = $region9
    $region8: #{tpu_custom_call.1} parent=1 // pred_region
      _
    $region9: #{tpu_custom_call.1} parent=1 // pred_fallthru
      _
    // Predicated region
    $region10: #{tpu_custom_call.1} parent=1 // pred_check
      _
    $region11: #{tpu_custom_call.1} parent=1 // pred_check_branch
      %14 = sbr.rel (0) target = $region13
    $region12: #{tpu_custom_call.1} parent=1 // pred_region
      _
    $region13: #{tpu_custom_call.1} parent=1 // pred_fallthru
      _
    %v16 = vld [vmem:[%s0] sm:$0xff]
    %v17 = vld [vmem:[%s0 + $0x8] sm:$0xff]
    %v18 = vld [vmem:[%s0 + $0x10] sm:$0xff]
    %v19 = vld [vmem:[%s0 + $0x18] sm:$0xff]
    %v20 = vld [vmem:[%s0 + $0x20] sm:$0xff]
    %v21 = vld [vmem:[%s0 + $0x28] sm:$0xff]
    %v22 = vld [vmem:[%s0 + $0x30] sm:$0xff]
    %v23 = vld [vmem:[%s0 + $0x38] sm:$0xff]
    %v24 = vld [vmem:[%s0 + $0x40] sm:$0xff]
    %v25 = vld [vmem:[%s0 + $0x48] sm:$0xff]
    %v26 = vld [vmem:[%s0 + $0x50] sm:$0xff]
    %v27 = vld [vmem:[%s0 + $0x58] sm:$0xff]
    %v28 = vld [vmem:[%s0 + $0x60] sm:$0xff]
    %v29 = vld [vmem:[%s0 + $0x68] sm:$0xff]
    %v30 = vld [vmem:[%s0 + $0x70] sm:$0xff]
    %v31 = vld [vmem:[%s0 + $0x78] sm:$0xff]
    %v32 = vld [vmem:[%s0 + $0x80] sm:$0xff]
    %v33 = vld [vmem:[%s0 + $0x88] sm:$0xff]
    %v34 = vld [vmem:[%s0 + $0x90] sm:$0xff]
    %v35 = vld [vmem:[%s0 + $0x98] sm:$0xff]
    %v36 = vld [vmem:[%s0 + $0xa0] sm:$0xff]
    %v37 = vld [vmem:[%s0 + $0xa8] sm:$0xff]
    %v38 = vld [vmem:[%s0 + $0xb0] sm:$0xff]
    %v39 = vld [vmem:[%s0 + $0xb8] sm:$0xff]
    %v40 = vld [vmem:[%s0 + $0xc0] sm:$0xff]
    %v41 = vld [vmem:[%s0 + $0xc8] sm:$0xff]
    %v42 = vld [vmem:[%s0 + $0xd0] sm:$0xff]
    %v43 = vld [vmem:[%s0 + $0xd8] sm:$0xff]
    %v44 = vld [vmem:[%s0 + $0xe0] sm:$0xff]
    %v45 = vld [vmem:[%s0 + $0xe8] sm:$0xff]
    %v46 = vld [vmem:[%s0 + $0xf0] sm:$0xff]
    %v47 = vld [vmem:[%s0 + $0xf8] sm:$0xff]
    %v48 = vld [vmem:[%s0 + $0x100] sm:$0xff]
    %v49 = vld [vmem:[%s0 + $0x108] sm:$0xff]
    %v50 = vld [vmem:[%s0 + $0x110] sm:$0xff]
    %v51 = vld [vmem:[%s0 + $0x118] sm:$0xff]
    %v52 = vld [vmem:[%s0 + $0x120] sm:$0xff]
    %v53 = vld [vmem:[%s0 + $0x128] sm:$0xff]
    %v54 = vld [vmem:[%s0 + $0x130] sm:$0xff]
    %v55 = vld [vmem:[%s0 + $0x138] sm:$0xff]
    %v56 = vld [vmem:[%s0 + $0x140] sm:$0xff]
    %v57 = vld [vmem:[%s0 + $0x148] sm:$0xff]
    %v58 = vld [vmem:[%s0 + $0x150] sm:$0xff]
    %v59 = vld [vmem:[%s0 + $0x158] sm:$0xff]
    %v60 = vld [vmem:[%s0 + $0x160] sm:$0xff]
    %v61 = vld [vmem:[%s0 + $0x168] sm:$0xff]
    %v62 = vld [vmem:[%s0 + $0x170] sm:$0xff]
    %v63 = vld [vmem:[%s0 + $0x178] sm:$0xff]
    %v64 = vld [vmem:[%s0 + $0x180] sm:$0xff]
    %v65 = vld [vmem:[%s0 + $0x188] sm:$0xff]
    %v66 = vld [vmem:[%s0 + $0x190] sm:$0xff]
    %v67 = vld [vmem:[%s0 + $0x198] sm:$0xff]
    %v68 = vld [vmem:[%s0 + $0x1a0] sm:$0xff]
    %v69 = vld [vmem:[%s0 + $0x1a8] sm:$0xff]
    %v70 = vld [vmem:[%s0 + $0x1b0] sm:$0xff]
    %v71 = vld [vmem:[%s0 + $0x1b8] sm:$0xff]
    %v72 = vld [vmem:[%s0 + $0x1c0] sm:$0xff]
    %v73 = vld [vmem:[%s0 + $0x1c8] sm:$0xff]
    %v74 = vld [vmem:[%s0 + $0x1d0] sm:$0xff]
    %v75 = vld [vmem:[%s0 + $0x1d8] sm:$0xff]
    %v76 = vld [vmem:[%s0 + $0x1e0] sm:$0xff]
    %v77 = vld [vmem:[%s0 + $0x1e8] sm:$0xff]
    %v78 = vld [vmem:[%s0 + $0x1f0] sm:$0xff]
    %v79 = vld [vmem:[%s0 + $0x1f8] sm:$0xff]
    %v80 = vpack.c.bf16 %v17, %v16
    %v81 = vpack.c.bf16 %v19, %v18
    %v82 = vpack.c.bf16 %v21, %v20
    %v83 = vpack.c.bf16 %v23, %v22
    %v84 = vpack.c.bf16 %v25, %v24
    %v85 = vpack.c.bf16 %v27, %v26
    %v86 = vpack.c.bf16 %v29, %v28
    %v87 = vpack.c.bf16 %v31, %v30
    %v88 = vpack.c.bf16 %v33, %v32
    %v89 = vpack.c.bf16 %v35, %v34
    %v90 = vpack.c.bf16 %v37, %v36
    %v91 = vpack.c.bf16 %v39, %v38
    %v92 = vpack.c.bf16 %v41, %v40
    %v93 = vpack.c.bf16 %v43, %v42
    %v94 = vpack.c.bf16 %v45, %v44
    %v95 = vpack.c.bf16 %v47, %v46
    %v96 = vpack.c.bf16 %v49, %v48
    %v97 = vpack.c.bf16 %v51, %v50
    %v98 = vpack.c.bf16 %v53, %v52
    %v99 = vpack.c.bf16 %v55, %v54
    %v100 = vpack.c.bf16 %v57, %v56
    %v101 = vpack.c.bf16 %v59, %v58
    %v102 = vpack.c.bf16 %v61, %v60
    %v103 = vpack.c.bf16 %v63, %v62
    %v104 = vpack.c.bf16 %v65, %v64
    %v105 = vpack.c.bf16 %v67, %v66
    %v106 = vpack.c.bf16 %v69, %v68
    %v107 = vpack.c.bf16 %v71, %v70
    %v108 = vpack.c.bf16 %v73, %v72
    %v109 = vpack.c.bf16 %v75, %v74
    %v110 = vpack.c.bf16 %v77, %v76
    %v111 = vpack.c.bf16 %v79, %v78
    %v112 = vld [vmem:[%s1] sm:$0xf]
    %v113 = vld [vmem:[%s2] sm:$0x3]
    %v115 = vlaneseq
    %v116 = vshrl.u32 %v115, 7
    %v117 = vsub.s32 0, %v116
    %v118 = vrot.slane %v113, %v117
    %v119 = vlaneseq
    %v120 = vshrl.u32 %v119, 7
    %v121 = vsub.s32 1, %v120
    %v122 = vrot.slane %v113, %v121
    %v127 = vunpack.c.l.s4 1983009808
    %v128 = vunpack.c.0.s8 %v127
    %v129 = vlaneseq
    %v130 = vshrl.u32 %v129, 7
    %v131 = vsub.s32 %v128, %v130
    %v132 = vrot.slane %v112, %v131
    %v133 = vcombine.high %v132, %v132
    %vm134 = vcmask 23552
    %v136 = vsel %vm134, %v80, 0
    %v139 = vsel %vm134, %v81, 0
    %v142 = vsel %vm134, %v82, 0
    %v145 = vsel %vm134, %v83, 0
    %v148 = vsel %vm134, %v84, 0
    %v151 = vsel %vm134, %v85, 0
    %v154 = vsel %vm134, %v86, 0
    %v157 = vsel %vm134, %v87, 0
    %v160 = vsel %vm134, %v88, 0
    %v163 = vsel %vm134, %v89, 0
    %v166 = vsel %vm134, %v90, 0
    %v169 = vsel %vm134, %v91, 0
    %v172 = vsel %vm134, %v92, 0
    %v175 = vsel %vm134, %v93, 0
    %v178 = vsel %vm134, %v94, 0
    %v181 = vsel %vm134, %v95, 0
    %v184 = vsel %vm134, %v96, 0
    %v187 = vsel %vm134, %v97, 0
    %v190 = vsel %vm134, %v98, 0
    %v193 = vsel %vm134, %v99, 0
    %v196 = vsel %vm134, %v100, 0
    %v199 = vsel %vm134, %v101, 0
    %v202 = vsel %vm134, %v102, 0
    %v205 = vsel %vm134, %v103, 0
    %v208 = vsel %vm134, %v104, 0
    %v211 = vsel %vm134, %v105, 0
    %v214 = vsel %vm134, %v106, 0
    %v217 = vsel %vm134, %v107, 0
    %v220 = vsel %vm134, %v108, 0
    %v223 = vsel %vm134, %v109, 0
    %v226 = vsel %vm134, %v110, 0
    %v229 = vsel %vm134, %v111, 0
    %vm231 = vcmask 1040384
    %vm232 = vcmask 1041408
    %v233 = vsel %vm231, 4294967295, 65535
    %v234 = vsel %vm232, %v233, 0
    %v236 = vand.u32 %v132, %v234
    %v239 = vand.u32 %v133, %v234
    %241 = vmatprep.subr.bf16.mxu0 0
    %242 = vmatpush1.bf16.msra.mxu0 0
    %243 = vmatprep.subr.bf16.mxu0 0
    %244 = vmatpush1.bf16.msra.mxu0 0
    %245 = vmatprep.subr.bf16.mxu0 0
    %246 = vmatpush1.bf16.msra.mxu0 0
    %247 = vmatprep.subr.bf16.mxu0 0
    %248 = vmatpush1.bf16.msra.mxu0 0
    %249 = vmatprep.subr.bf16.mxu0 0
    %250 = vmatpush1.bf16.msra.mxu0 0
    %251 = vmatprep.subr.bf16.mxu0 0
    %252 = vmatpush1.bf16.msra.mxu0 0
    %253 = vmatprep.subr.bf16.mxu0 0
    %254 = vmatpush1.bf16.msra.mxu0 0
    %255 = vmatprep.subr.bf16.mxu0 %v239
    %256 = vmatpush1.bf16.msra.mxu0 %v236
    %257 = vmatprep.subr.bf16.mxu0 0
    %258 = vmatpush2.bf16.msra.mxu0 0
    %259 = vmatprep.subr.bf16.mxu0 0
    %260 = vmatpush2.bf16.msra.mxu0 0
    %261 = vmatprep.subr.bf16.mxu0 0
    %262 = vmatpush2.bf16.msra.mxu0 0
    %263 = vmatprep.subr.bf16.mxu0 0
    %264 = vmatpush2.bf16.msra.mxu0 0
    %265 = vmatprep.subr.bf16.mxu0 0
    %266 = vmatpush2.bf16.msra.mxu0 0
    %267 = vmatprep.subr.bf16.mxu0 0
    %268 = vmatpush2.bf16.msra.mxu0 0
    %269 = vmatprep.subr.bf16.mxu0 0
    %270 = vmatpush2.bf16.msra.mxu0 0
    %271 = vmatprep.subr.bf16.mxu0 0
    %272 = vmatpush2.bf16.msra.mxu0 0
    %273 = vmatprep.mubr.bf16.mxu0 0
    %274 = vmatmul.mubr.bf16.gmra.mxu0 %v136
    %v275 = vpop.f32.mrf.mxu0
    %v276 = vadd.f32 %v118, %v275
    %v277 = vpop.f32.mrf.mxu0
    %v278 = vadd.f32 %v122, %v277
    %v279 = vpop.f32.mrf.mxu0
    %v280 = vadd.f32 %v118, %v279
    %v281 = vpop.f32.mrf.mxu0
    %v282 = vadd.f32 %v122, %v281
    %283 = vmatprep.mubr.bf16.mxu0 0
    %284 = vmatmul.mubr.bf16.gmra.mxu0 %v139
    %v285 = vpop.f32.mrf.mxu0
    %v286 = vadd.f32 %v118, %v285
    %v287 = vpop.f32.mrf.mxu0
    %v288 = vadd.f32 %v122, %v287
    %v289 = vpop.f32.mrf.mxu0
    %v290 = vadd.f32 %v118, %v289
    %v291 = vpop.f32.mrf.mxu0
    %v292 = vadd.f32 %v122, %v291
    %293 = vmatprep.mubr.bf16.mxu0 0
    %294 = vmatmul.mubr.bf16.gmra.mxu0 %v142
    %v295 = vpop.f32.mrf.mxu0
    %v296 = vadd.f32 %v118, %v295
    %v297 = vpop.f32.mrf.mxu0
    %v298 = vadd.f32 %v122, %v297
    %v299 = vpop.f32.mrf.mxu0
    %v300 = vadd.f32 %v118, %v299
    %v301 = vpop.f32.mrf.mxu0
    %v302 = vadd.f32 %v122, %v301
    %303 = vmatprep.mubr.bf16.mxu0 0
    %304 = vmatmul.mubr.bf16.gmra.mxu0 %v145
    %v305 = vpop.f32.mrf.mxu0
    %v306 = vadd.f32 %v118, %v305
    %v307 = vpop.f32.mrf.mxu0
    %v308 = vadd.f32 %v122, %v307
    %v309 = vpop.f32.mrf.mxu0
    %v310 = vadd.f32 %v118, %v309
    %v311 = vpop.f32.mrf.mxu0
    %v312 = vadd.f32 %v122, %v311
    %313 = vmatprep.mubr.bf16.mxu0 0
    %314 = vmatmul.mubr.bf16.gmra.mxu0 %v148
    %v315 = vpop.f32.mrf.mxu0
    %v316 = vadd.f32 %v118, %v315
    %v317 = vpop.f32.mrf.mxu0
    %v318 = vadd.f32 %v122, %v317
    %v319 = vpop.f32.mrf.mxu0
    %v320 = vadd.f32 %v118, %v319
    %v321 = vpop.f32.mrf.mxu0
    %v322 = vadd.f32 %v122, %v321
    %323 = vmatprep.mubr.bf16.mxu0 0
    %324 = vmatmul.mubr.bf16.gmra.mxu0 %v151
    %v325 = vpop.f32.mrf.mxu0
    %v326 = vadd.f32 %v118, %v325
    %v327 = vpop.f32.mrf.mxu0
    %v328 = vadd.f32 %v122, %v327
    %v329 = vpop.f32.mrf.mxu0
    %v330 = vadd.f32 %v118, %v329
    %v331 = vpop.f32.mrf.mxu0
    %v332 = vadd.f32 %v122, %v331
    %333 = vmatprep.mubr.bf16.mxu0 0
    %334 = vmatmul.mubr.bf16.gmra.mxu0 %v154
    %v335 = vpop.f32.mrf.mxu0
    %v336 = vadd.f32 %v118, %v335
    %v337 = vpop.f32.mrf.mxu0
    %v338 = vadd.f32 %v122, %v337
    %v339 = vpop.f32.mrf.mxu0
    %v340 = vadd.f32 %v118, %v339
    %v341 = vpop.f32.mrf.mxu0
    %v342 = vadd.f32 %v122, %v341
    %343 = vmatprep.mubr.bf16.mxu0 0
    %344 = vmatmul.mubr.bf16.gmra.mxu0 %v157
    %v345 = vpop.f32.mrf.mxu0
    %v346 = vadd.f32 %v118, %v345
    %v347 = vpop.f32.mrf.mxu0
    %v348 = vadd.f32 %v122, %v347
    %v349 = vpop.f32.mrf.mxu0
    %v350 = vadd.f32 %v118, %v349
    %v351 = vpop.f32.mrf.mxu0
    %v352 = vadd.f32 %v122, %v351
    %353 = vmatprep.mubr.bf16.mxu0 0
    %354 = vmatmul.mubr.bf16.gmra.mxu0 %v160
    %v355 = vpop.f32.mrf.mxu0
    %v356 = vadd.f32 %v118, %v355
    %v357 = vpop.f32.mrf.mxu0
    %v358 = vadd.f32 %v122, %v357
    %v359 = vpop.f32.mrf.mxu0
    %v360 = vadd.f32 %v118, %v359
    %v361 = vpop.f32.mrf.mxu0
    %v362 = vadd.f32 %v122, %v361
    %363 = vmatprep.mubr.bf16.mxu0 0
    %364 = vmatmul.mubr.bf16.gmra.mxu0 %v163
    %v365 = vpop.f32.mrf.mxu0
    %v366 = vadd.f32 %v118, %v365
    %v367 = vpop.f32.mrf.mxu0
    %v368 = vadd.f32 %v122, %v367
    %v369 = vpop.f32.mrf.mxu0
    %v370 = vadd.f32 %v118, %v369
    %v371 = vpop.f32.mrf.mxu0
    %v372 = vadd.f32 %v122, %v371
    %373 = vmatprep.mubr.bf16.mxu0 0
    %374 = vmatmul.mubr.bf16.gmra.mxu0 %v166
    %v375 = vpop.f32.mrf.mxu0
    %v376 = vadd.f32 %v118, %v375
    %v377 = vpop.f32.mrf.mxu0
    %v378 = vadd.f32 %v122, %v377
    %v379 = vpop.f32.mrf.mxu0
    %v380 = vadd.f32 %v118, %v379
    %v381 = vpop.f32.mrf.mxu0
    %v382 = vadd.f32 %v122, %v381
    %383 = vmatprep.mubr.bf16.mxu0 0
    %384 = vmatmul.mubr.bf16.gmra.mxu0 %v169
    %v385 = vpop.f32.mrf.mxu0
    %v386 = vadd.f32 %v118, %v385
    %v387 = vpop.f32.mrf.mxu0
    %v388 = vadd.f32 %v122, %v387
    %v389 = vpop.f32.mrf.mxu0
    %v390 = vadd.f32 %v118, %v389
    %v391 = vpop.f32.mrf.mxu0
    %v392 = vadd.f32 %v122, %v391
    %393 = vmatprep.mubr.bf16.mxu0 0
    %394 = vmatmul.mubr.bf16.gmra.mxu0 %v172
    %v395 = vpop.f32.mrf.mxu0
    %v396 = vadd.f32 %v118, %v395
    %v397 = vpop.f32.mrf.mxu0
    %v398 = vadd.f32 %v122, %v397
    %v399 = vpop.f32.mrf.mxu0
    %v400 = vadd.f32 %v118, %v399
    %v401 = vpop.f32.mrf.mxu0
    %v402 = vadd.f32 %v122, %v401
    %403 = vmatprep.mubr.bf16.mxu0 0
    %404 = vmatmul.mubr.bf16.gmra.mxu0 %v175
    %v405 = vpop.f32.mrf.mxu0
    %v406 = vadd.f32 %v118, %v405
    %v407 = vpop.f32.mrf.mxu0
    %v408 = vadd.f32 %v122, %v407
    %v409 = vpop.f32.mrf.mxu0
    %v410 = vadd.f32 %v118, %v409
    %v411 = vpop.f32.mrf.mxu0
    %v412 = vadd.f32 %v122, %v411
    %413 = vmatprep.mubr.bf16.mxu0 0
    %414 = vmatmul.mubr.bf16.gmra.mxu0 %v178
    %v415 = vpop.f32.mrf.mxu0
    %v416 = vadd.f32 %v118, %v415
    %v417 = vpop.f32.mrf.mxu0
    %v418 = vadd.f32 %v122, %v417
    %v419 = vpop.f32.mrf.mxu0
    %v420 = vadd.f32 %v118, %v419
    %v421 = vpop.f32.mrf.mxu0
    %v422 = vadd.f32 %v122, %v421
    %423 = vmatprep.mubr.bf16.mxu0 0
    %424 = vmatmul.mubr.bf16.gmra.mxu0 %v181
    %v425 = vpop.f32.mrf.mxu0
    %v426 = vadd.f32 %v118, %v425
    %v427 = vpop.f32.mrf.mxu0
    %v428 = vadd.f32 %v122, %v427
    %v429 = vpop.f32.mrf.mxu0
    %v430 = vadd.f32 %v118, %v429
    %v431 = vpop.f32.mrf.mxu0
    %v432 = vadd.f32 %v122, %v431
    %433 = vmatprep.mubr.bf16.mxu0 0
    %434 = vmatmul.mubr.bf16.gmra.mxu0 %v184
    %v435 = vpop.f32.mrf.mxu0
    %v436 = vadd.f32 %v118, %v435
    %v437 = vpop.f32.mrf.mxu0
    %v438 = vadd.f32 %v122, %v437
    %v439 = vpop.f32.mrf.mxu0
    %v440 = vadd.f32 %v118, %v439
    %v441 = vpop.f32.mrf.mxu0
    %v442 = vadd.f32 %v122, %v441
    %443 = vmatprep.mubr.bf16.mxu0 0
    %444 = vmatmul.mubr.bf16.gmra.mxu0 %v187
    %v445 = vpop.f32.mrf.mxu0
    %v446 = vadd.f32 %v118, %v445
    %v447 = vpop.f32.mrf.mxu0
    %v448 = vadd.f32 %v122, %v447
    %v449 = vpop.f32.mrf.mxu0
    %v450 = vadd.f32 %v118, %v449
    %v451 = vpop.f32.mrf.mxu0
    %v452 = vadd.f32 %v122, %v451
    %453 = vmatprep.mubr.bf16.mxu0 0
    %454 = vmatmul.mubr.bf16.gmra.mxu0 %v190
    %v455 = vpop.f32.mrf.mxu0
    %v456 = vadd.f32 %v118, %v455
    %v457 = vpop.f32.mrf.mxu0
    %v458 = vadd.f32 %v122, %v457
    %v459 = vpop.f32.mrf.mxu0
    %v460 = vadd.f32 %v118, %v459
    %v461 = vpop.f32.mrf.mxu0
    %v462 = vadd.f32 %v122, %v461
    %463 = vmatprep.mubr.bf16.mxu0 0
    %464 = vmatmul.mubr.bf16.gmra.mxu0 %v193
    %v465 = vpop.f32.mrf.mxu0
    %v466 = vadd.f32 %v118, %v465
    %v467 = vpop.f32.mrf.mxu0
    %v468 = vadd.f32 %v122, %v467
    %v469 = vpop.f32.mrf.mxu0
    %v470 = vadd.f32 %v118, %v469
    %v471 = vpop.f32.mrf.mxu0
    %v472 = vadd.f32 %v122, %v471
    %473 = vmatprep.mubr.bf16.mxu0 0
    %474 = vmatmul.mubr.bf16.gmra.mxu0 %v196
    %v475 = vpop.f32.mrf.mxu0
    %v476 = vadd.f32 %v118, %v475
    %v477 = vpop.f32.mrf.mxu0
    %v478 = vadd.f32 %v122, %v477
    %v479 = vpop.f32.mrf.mxu0
    %v480 = vadd.f32 %v118, %v479
    %v481 = vpop.f32.mrf.mxu0
    %v482 = vadd.f32 %v122, %v481
    %483 = vmatprep.mubr.bf16.mxu0 0
    %484 = vmatmul.mubr.bf16.gmra.mxu0 %v199
    %v485 = vpop.f32.mrf.mxu0
    %v486 = vadd.f32 %v118, %v485
    %v487 = vpop.f32.mrf.mxu0
    %v488 = vadd.f32 %v122, %v487
    %v489 = vpop.f32.mrf.mxu0
    %v490 = vadd.f32 %v118, %v489
    %v491 = vpop.f32.mrf.mxu0
    %v492 = vadd.f32 %v122, %v491
    %493 = vmatprep.mubr.bf16.mxu0 0
    %494 = vmatmul.mubr.bf16.gmra.mxu0 %v202
    %v495 = vpop.f32.mrf.mxu0
    %v496 = vadd.f32 %v118, %v495
    %v497 = vpop.f32.mrf.mxu0
    %v498 = vadd.f32 %v122, %v497
    %v499 = vpop.f32.mrf.mxu0
    %v500 = vadd.f32 %v118, %v499
    %v501 = vpop.f32.mrf.mxu0
    %v502 = vadd.f32 %v122, %v501
    %503 = vmatprep.mubr.bf16.mxu0 0
    %504 = vmatmul.mubr.bf16.gmra.mxu0 %v205
    %v505 = vpop.f32.mrf.mxu0
    %v506 = vadd.f32 %v118, %v505
    %v507 = vpop.f32.mrf.mxu0
    %v508 = vadd.f32 %v122, %v507
    %v509 = vpop.f32.mrf.mxu0
    %v510 = vadd.f32 %v118, %v509
    %v511 = vpop.f32.mrf.mxu0
    %v512 = vadd.f32 %v122, %v511
    %513 = vmatprep.mubr.bf16.mxu0 0
    %514 = vmatmul.mubr.bf16.gmra.mxu0 %v208
    %v515 = vpop.f32.mrf.mxu0
    %v516 = vadd.f32 %v118, %v515
    %v517 = vpop.f32.mrf.mxu0
    %v518 = vadd.f32 %v122, %v517
    %v519 = vpop.f32.mrf.mxu0
    %v520 = vadd.f32 %v118, %v519
    %v521 = vpop.f32.mrf.mxu0
    %v522 = vadd.f32 %v122, %v521
    %523 = vmatprep.mubr.bf16.mxu0 0
    %524 = vmatmul.mubr.bf16.gmra.mxu0 %v211
    %v525 = vpop.f32.mrf.mxu0
    %v526 = vadd.f32 %v118, %v525
    %v527 = vpop.f32.mrf.mxu0
    %v528 = vadd.f32 %v122, %v527
    %v529 = vpop.f32.mrf.mxu0
    %v530 = vadd.f32 %v118, %v529
    %v531 = vpop.f32.mrf.mxu0
    %v532 = vadd.f32 %v122, %v531
    %533 = vmatprep.mubr.bf16.mxu0 0
    %534 = vmatmul.mubr.bf16.gmra.mxu0 %v214
    %v535 = vpop.f32.mrf.mxu0
    %v536 = vadd.f32 %v118, %v535
    %v537 = vpop.f32.mrf.mxu0
    %v538 = vadd.f32 %v122, %v537
    %v539 = vpop.f32.mrf.mxu0
    %v540 = vadd.f32 %v118, %v539
    %v541 = vpop.f32.mrf.mxu0
    %v542 = vadd.f32 %v122, %v541
    %543 = vmatprep.mubr.bf16.mxu0 0
    %544 = vmatmul.mubr.bf16.gmra.mxu0 %v217
    %v545 = vpop.f32.mrf.mxu0
    %v546 = vadd.f32 %v118, %v545
    %v547 = vpop.f32.mrf.mxu0
    %v548 = vadd.f32 %v122, %v547
    %v549 = vpop.f32.mrf.mxu0
    %v550 = vadd.f32 %v118, %v549
    %v551 = vpop.f32.mrf.mxu0
    %v552 = vadd.f32 %v122, %v551
    %553 = vmatprep.mubr.bf16.mxu0 0
    %554 = vmatmul.mubr.bf16.gmra.mxu0 %v220
    %v555 = vpop.f32.mrf.mxu0
    %v556 = vadd.f32 %v118, %v555
    %v557 = vpop.f32.mrf.mxu0
    %v558 = vadd.f32 %v122, %v557
    %v559 = vpop.f32.mrf.mxu0
    %v560 = vadd.f32 %v118, %v559
    %v561 = vpop.f32.mrf.mxu0
    %v562 = vadd.f32 %v122, %v561
    %563 = vmatprep.mubr.bf16.mxu0 0
    %564 = vmatmul.mubr.bf16.gmra.mxu0 %v223
    %v565 = vpop.f32.mrf.mxu0
    %v566 = vadd.f32 %v118, %v565
    %v567 = vpop.f32.mrf.mxu0
    %v568 = vadd.f32 %v122, %v567
    %v569 = vpop.f32.mrf.mxu0
    %v570 = vadd.f32 %v118, %v569
    %v571 = vpop.f32.mrf.mxu0
    %v572 = vadd.f32 %v122, %v571
    %573 = vmatprep.mubr.bf16.mxu0 0
    %574 = vmatmul.mubr.bf16.gmra.mxu0 %v226
    %v575 = vpop.f32.mrf.mxu0
    %v576 = vadd.f32 %v118, %v575
    %v577 = vpop.f32.mrf.mxu0
    %v578 = vadd.f32 %v122, %v577
    %v579 = vpop.f32.mrf.mxu0
    %v580 = vadd.f32 %v118, %v579
    %v581 = vpop.f32.mrf.mxu0
    %v582 = vadd.f32 %v122, %v581
    %583 = vmatprep.mubr.bf16.mxu0 0
    %584 = vmatmul.mubr.bf16.gmra.mxu0 %v229
    %v585 = vpop.f32.mrf.mxu0
    %v586 = vadd.f32 %v118, %v585
    %v587 = vpop.f32.mrf.mxu0
    %v588 = vadd.f32 %v122, %v587
    %v589 = vpop.f32.mrf.mxu0
    %v590 = vadd.f32 %v118, %v589
    %v591 = vpop.f32.mrf.mxu0
    %v592 = vadd.f32 %v122, %v591
    %593 = vdwg.mxu0
    %594 = vst [vmem:[#allocation2] sm:$0xff] %v276
    %595 = vst [vmem:[#allocation2 + $0x8] sm:$0xff] %v278
    %596 = vst [vmem:[#allocation2 + $0x10] sm:$0xff] %v280
    %597 = vst [vmem:[#allocation2 + $0x18] sm:$0xff] %v282
    %598 = vst [vmem:[#allocation2 + $0x20] sm:$0xff] %v286
    %599 = vst [vmem:[#allocation2 + $0x28] sm:$0xff] %v288
    %600 = vst [vmem:[#allocation2 + $0x30] sm:$0xff] %v290
    %601 = vst [vmem:[#allocation2 + $0x38] sm:$0xff] %v292
    %602 = vst [vmem:[#allocation2 + $0x40] sm:$0xff] %v296
    %603 = vst [vmem:[#allocation2 + $0x48] sm:$0xff] %v298
    %604 = vst [vmem:[#allocation2 + $0x50] sm:$0xff] %v300
    %605 = vst [vmem:[#allocation2 + $0x58] sm:$0xff] %v302
    %606 = vst [vmem:[#allocation2 + $0x60] sm:$0xff] %v306
    %607 = vst [vmem:[#allocation2 + $0x68] sm:$0xff] %v308
    %608 = vst [vmem:[#allocation2 + $0x70] sm:$0xff] %v310
    %609 = vst [vmem:[#allocation2 + $0x78] sm:$0xff] %v312
    %610 = vst [vmem:[#allocation2 + $0x80] sm:$0xff] %v316
    %611 = vst [vmem:[#allocation2 + $0x88] sm:$0xff] %v318
    %612 = vst [vmem:[#allocation2 + $0x90] sm:$0xff] %v320
    %613 = vst [vmem:[#allocation2 + $0x98] sm:$0xff] %v322
    %614 = vst [vmem:[#allocation2 + $0xa0] sm:$0xff] %v326
    %615 = vst [vmem:[#allocation2 + $0xa8] sm:$0xff] %v328
    %616 = vst [vmem:[#allocation2 + $0xb0] sm:$0xff] %v330
    %617 = vst [vmem:[#allocation2 + $0xb8] sm:$0xff] %v332
    %618 = vst [vmem:[#allocation2 + $0xc0] sm:$0xff] %v336
    %619 = vst [vmem:[#allocation2 + $0xc8] sm:$0xff] %v338
    %620 = vst [vmem:[#allocation2 + $0xd0] sm:$0xff] %v340
    %621 = vst [vmem:[#allocation2 + $0xd8] sm:$0xff] %v342
    %622 = vst [vmem:[#allocation2 + $0xe0] sm:$0xff] %v346
    %623 = vst [vmem:[#allocation2 + $0xe8] sm:$0xff] %v348
    %624 = vst [vmem:[#allocation2 + $0xf0] sm:$0xff] %v350
    %625 = vst [vmem:[#allocation2 + $0xf8] sm:$0xff] %v352
    %626 = vst [vmem:[#allocation2 + $0x100] sm:$0xff] %v356
    %627 = vst [vmem:[#allocation2 + $0x108] sm:$0xff] %v358
    %628 = vst [vmem:[#allocation2 + $0x110] sm:$0xff] %v360
    %629 = vst [vmem:[#allocation2 + $0x118] sm:$0xff] %v362
    %630 = vst [vmem:[#allocation2 + $0x120] sm:$0xff] %v366
    %631 = vst [vmem:[#allocation2 + $0x128] sm:$0xff] %v368
    %632 = vst [vmem:[#allocation2 + $0x130] sm:$0xff] %v370
    %633 = vst [vmem:[#allocation2 + $0x138] sm:$0xff] %v372
    %634 = vst [vmem:[#allocation2 + $0x140] sm:$0xff] %v376
    %635 = vst [vmem:[#allocation2 + $0x148] sm:$0xff] %v378
    %636 = vst [vmem:[#allocation2 + $0x150] sm:$0xff] %v380
    %637 = vst [vmem:[#allocation2 + $0x158] sm:$0xff] %v382
    %638 = vst [vmem:[#allocation2 + $0x160] sm:$0xff] %v386
    %639 = vst [vmem:[#allocation2 + $0x168] sm:$0xff] %v388
    %640 = vst [vmem:[#allocation2 + $0x170] sm:$0xff] %v390
    %641 = vst [vmem:[#allocation2 + $0x178] sm:$0xff] %v392
    %642 = vst [vmem:[#allocation2 + $0x180] sm:$0xff] %v396
    %643 = vst [vmem:[#allocation2 + $0x188] sm:$0xff] %v398
    %644 = vst [vmem:[#allocation2 + $0x190] sm:$0xff] %v400
    %645 = vst [vmem:[#allocation2 + $0x198] sm:$0xff] %v402
    %646 = vst [vmem:[#allocation2 + $0x1a0] sm:$0xff] %v406
    %647 = vst [vmem:[#allocation2 + $0x1a8] sm:$0xff] %v408
    %648 = vst [vmem:[#allocation2 + $0x1b0] sm:$0xff] %v410
    %649 = vst [vmem:[#allocation2 + $0x1b8] sm:$0xff] %v412
    %650 = vst [vmem:[#allocation2 + $0x1c0] sm:$0xff] %v416
    %651 = vst [vmem:[#allocation2 + $0x1c8] sm:$0xff] %v418
    %652 = vst [vmem:[#allocation2 + $0x1d0] sm:$0xff] %v420
    %653 = vst [vmem:[#allocation2 + $0x1d8] sm:$0xff] %v422
    %654 = vst [vmem:[#allocation2 + $0x1e0] sm:$0xff] %v426
    %655 = vst [vmem:[#allocation2 + $0x1e8] sm:$0xff] %v428
    %656 = vst [vmem:[#allocation2 + $0x1f0] sm:$0xff] %v430
    %657 = vst [vmem:[#allocation2 + $0x1f8] sm:$0xff] %v432
    %658 = vst [vmem:[#allocation2 + $0x200] sm:$0xff] %v436
    %659 = vst [vmem:[#allocation2 + $0x208] sm:$0xff] %v438
    %660 = vst [vmem:[#allocation2 + $0x210] sm:$0xff] %v440
    %661 = vst [vmem:[#allocation2 + $0x218] sm:$0xff] %v442
    %662 = vst [vmem:[#allocation2 + $0x220] sm:$0xff] %v446
    %663 = vst [vmem:[#allocation2 + $0x228] sm:$0xff] %v448
    %664 = vst [vmem:[#allocation2 + $0x230] sm:$0xff] %v450
    %665 = vst [vmem:[#allocation2 + $0x238] sm:$0xff] %v452
    %666 = vst [vmem:[#allocation2 + $0x240] sm:$0xff] %v456
    %667 = vst [vmem:[#allocation2 + $0x248] sm:$0xff] %v458
    %668 = vst [vmem:[#allocation2 + $0x250] sm:$0xff] %v460
    %669 = vst [vmem:[#allocation2 + $0x258] sm:$0xff] %v462
    %670 = vst [vmem:[#allocation2 + $0x260] sm:$0xff] %v466
    %671 = vst [vmem:[#allocation2 + $0x268] sm:$0xff] %v468
    %672 = vst [vmem:[#allocation2 + $0x270] sm:$0xff] %v470
    %673 = vst [vmem:[#allocation2 + $0x278] sm:$0xff] %v472
    %674 = vst [vmem:[#allocation2 + $0x280] sm:$0xff] %v476
    %675 = vst [vmem:[#allocation2 + $0x288] sm:$0xff] %v478
    %676 = vst [vmem:[#allocation2 + $0x290] sm:$0xff] %v480
    %677 = vst [vmem:[#allocation2 + $0x298] sm:$0xff] %v482
    %678 = vst [vmem:[#allocation2 + $0x2a0] sm:$0xff] %v486
    %679 = vst [vmem:[#allocation2 + $0x2a8] sm:$0xff] %v488
    %680 = vst [vmem:[#allocation2 + $0x2b0] sm:$0xff] %v490
    %681 = vst [vmem:[#allocation2 + $0x2b8] sm:$0xff] %v492
    %682 = vst [vmem:[#allocation2 + $0x2c0] sm:$0xff] %v496
    %683 = vst [vmem:[#allocation2 + $0x2c8] sm:$0xff] %v498
    %684 = vst [vmem:[#allocation2 + $0x2d0] sm:$0xff] %v500
    %685 = vst [vmem:[#allocation2 + $0x2d8] sm:$0xff] %v502
    %686 = vst [vmem:[#allocation2 + $0x2e0] sm:$0xff] %v506
    %687 = vst [vmem:[#allocation2 + $0x2e8] sm:$0xff] %v508
    %688 = vst [vmem:[#allocation2 + $0x2f0] sm:$0xff] %v510
    %689 = vst [vmem:[#allocation2 + $0x2f8] sm:$0xff] %v512
    %690 = vst [vmem:[#allocation2 + $0x300] sm:$0xff] %v516
    %691 = vst [vmem:[#allocation2 + $0x308] sm:$0xff] %v518
    %692 = vst [vmem:[#allocation2 + $0x310] sm:$0xff] %v520
    %693 = vst [vmem:[#allocation2 + $0x318] sm:$0xff] %v522
    %694 = vst [vmem:[#allocation2 + $0x320] sm:$0xff] %v526
    %695 = vst [vmem:[#allocation2 + $0x328] sm:$0xff] %v528
    %696 = vst [vmem:[#allocation2 + $0x330] sm:$0xff] %v530
    %697 = vst [vmem:[#allocation2 + $0x338] sm:$0xff] %v532
    %698 = vst [vmem:[#allocation2 + $0x340] sm:$0xff] %v536
    %699 = vst [vmem:[#allocation2 + $0x348] sm:$0xff] %v538
    %700 = vst [vmem:[#allocation2 + $0x350] sm:$0xff] %v540
    %701 = vst [vmem:[#allocation2 + $0x358] sm:$0xff] %v542
    %702 = vst [vmem:[#allocation2 + $0x360] sm:$0xff] %v546
    %703 = vst [vmem:[#allocation2 + $0x368] sm:$0xff] %v548
    %704 = vst [vmem:[#allocation2 + $0x370] sm:$0xff] %v550
    %705 = vst [vmem:[#allocation2 + $0x378] sm:$0xff] %v552
    %706 = vst [vmem:[#allocation2 + $0x380] sm:$0xff] %v556
    %707 = vst [vmem:[#allocation2 + $0x388] sm:$0xff] %v558
    %708 = vst [vmem:[#allocation2 + $0x390] sm:$0xff] %v560
    %709 = vst [vmem:[#allocation2 + $0x398] sm:$0xff] %v562
    %710 = vst [vmem:[#allocation2 + $0x3a0] sm:$0xff] %v566
    %711 = vst [vmem:[#allocation2 + $0x3a8] sm:$0xff] %v568
    %712 = vst [vmem:[#allocation2 + $0x3b0] sm:$0xff] %v570
    %713 = vst [vmem:[#allocation2 + $0x3b8] sm:$0xff] %v572
    %714 = vst [vmem:[#allocation2 + $0x3c0] sm:$0xff] %v576
    %715 = vst [vmem:[#allocation2 + $0x3c8] sm:$0xff] %v578
    %716 = vst [vmem:[#allocation2 + $0x3d0] sm:$0xff] %v580
    %717 = vst [vmem:[#allocation2 + $0x3d8] sm:$0xff] %v582
    %718 = vst [vmem:[#allocation2 + $0x3e0] sm:$0xff] %v586
    %719 = vst [vmem:[#allocation2 + $0x3e8] sm:$0xff] %v588
    %720 = vst [vmem:[#allocation2 + $0x3f0] sm:$0xff] %v590
    %721 = vst [vmem:[#allocation2 + $0x3f8] sm:$0xff] %v592
    // Predicated region
    $region14: #{tpu_custom_call.1} parent=1 // pred_check
      _
    $region15: #{tpu_custom_call.1} parent=1 // pred_check_branch
      %723 = sbr.rel (0) target = $region17
    $region16: #{tpu_custom_call.1} parent=1 // pred_region
      %s725 = ssub.s32 16384, 16384
      %726 = vsyncadd [#allocation3], %s725
      %s727 = sshll.u32 [#allocation2], 4
      %s728 = int_to_ptr.vmem [resolvable:$true] %s727
      %733 = dma.vmem_to_hbm [thread:$0]  %s728, 16384, %s3, [#allocation3], 256, 256, 16
    $region17: #{tpu_custom_call.1} parent=1 // pred_fallthru
      _
    // Predicated region
    $region18: #{tpu_custom_call.1} parent=1 // pred_check
      _
    $region19: #{tpu_custom_call.1} parent=1 // pred_check_branch
      %735 = sbr.rel (0) target = $region21
    $region20: #{tpu_custom_call.1} parent=1 // pred_region
      %736 = dma.done [#allocation3], 16384
    $region21: #{tpu_custom_call.1} parent=1 // pred_fallthru
      _
    %737 = vsyncpa [#allocation3], 1

</llo_original>
